<compile_context>
chip_gen: v7x
topology: tpu7x:2x2x1
jax: 0.10.0
libtpu: 0.0.40
codegen_flags: <defaults>
</compile_context>

<pallas_src>
import functools
import math

import jax
import jax.numpy as jnp
from jax import lax
from jax.experimental import pallas as pl
from jax.experimental.pallas import tpu as pltpu

EPS_LN = 1e-5          # PyTorch nn.LayerNorm default
EPS_NORM = 1e-12       # F.normalize default eps


# ----------------------------------------------------------------------------- helpers
def _round_up(v, m):
    return ((v + m - 1) // m) * m


def _pad_seq(s):
    """Pad sequence length to a vreg/MXU-friendly size (197->256, 77->128, toy stays small)."""
    return _round_up(s, 128) if s > 64 else _round_up(s, 8)


@functools.lru_cache(maxsize=1)
def _vmem_limit_bytes():
    """Generation-aware scoped-VMEM budget: ~78% of physical, capped at 100 MiB."""
    cap = 128 * 1024 * 1024
    try:
        info = pltpu.get_tpu_info()
        cap = int(getattr(info, "vmem_capacity_bytes", cap))
    except Exception:
        pass
    return min(int(cap * 0.78), 100 * 1024 * 1024)


def _ln(x, w, b):
    """LayerNorm with stats in fp32 regardless of matmul dtype."""
    x = x.astype(jnp.float32)
    mu = jnp.mean(x, axis=-1, keepdims=True)
    var = jnp.mean((x - mu) ** 2, axis=-1, keepdims=True)
    return (x - mu) * lax.rsqrt(var + EPS_LN) * w + b


# ----------------------------------------------------------------------------- linear (patch-embed conv as matmul), M-tiled
def _linear_kernel(x_ref, w_ref, o_ref):
    o_ref[...] = jnp.dot(x_ref[...], w_ref[...], preferred_element_type=jnp.float32)


def pallas_linear(x_bf16, wt_bf16):
    """x_bf16: (M, K) bf16 (pre-cast in wrapper).  wt_bf16: (K, N) bf16 pre-transposed."""
    M, K = x_bf16.shape
    N = wt_bf16.shape[1]
    tm = M if M <= 512 else 512          # full-dim for small M, 512 tiles (cdiv grid) otherwise
    return pl.pallas_call(
        _linear_kernel,
        out_shape=jax.ShapeDtypeStruct((M, N), jnp.float32),
        grid=(pl.cdiv(M, tm),),
        in_specs=[pl.BlockSpec((tm, K), lambda i: (i, 0)),
                  pl.BlockSpec((K, N), lambda i: (0, 0))],
        out_specs=pl.BlockSpec((tm, N), lambda i: (i, 0)),
        compiler_params=pltpu.CompilerParams(
            dimension_semantics=("parallel",),
            vmem_limit_bytes=_vmem_limit_bytes()),
    )(x_bf16, wt_bf16)


# ----------------------------------------------------------------------------- layer-fused transformer tower
# grid = (B, L): batch outer ("parallel" -> megacore on v7x), layers inner ("arbitrary").
# Residual carried in a VMEM scratch; per-layer weights streamed via BlockSpec pipeline.
# Only the pooled row (CLS / EOT) is written out.
def _tower_kernel(*refs, heads, causal, s_real, fuse_input_ln):
    eot_ref, x_ref = refs[0], refs[1]
    idx = 2
    if fuse_input_ln:
        lnpre_w, lnpre_b = refs[2], refs[3]
        idx = 4
    (ln1w, ln1b, wqkv, bqkv, wo, bo,
     ln2w, ln2b, wfc, bfc, wpr, bpr,
     pooled_ref, res_ref) = refs[idx:]

    b = pl.program_id(0)
    l = pl.program_id(1)
    n_layers = pl.num_programs(1)

    @pl.when(l == 0)
    def _():
        x0 = x_ref[0].astype(jnp.float32)
        if fuse_input_ln:
            x0 = _ln(x0, lnpre_w[...], lnpre_b[...])      # fused ln_pre (vision tower)
        res_ref[...] = x0

    x = res_ref[...]                                      # (S, D) fp32 residual stream
    S, D = x.shape
    hd = D // heads

    # ---- multi-head self-attention (nn.MultiheadAttention semantics) ----
    h = _ln(x, ln1w[0], ln1b[0]).astype(jnp.bfloat16)
    # 1/sqrt(hd) is folded into the q-slice of wqkv at init time.
    qkv = jnp.dot(h, wqkv[0], preferred_element_type=jnp.float32) + bqkv[0]       # (S, 3D) fp32

    def heads_major(t):  # (S, D) -> (heads, S, hd): ONE reshape+transpose (no per-head stack)
        return t.astype(jnp.bfloat16).reshape(S, heads, hd).transpose(1, 0, 2)

    q = heads_major(qkv[:, 0:D])
    k = heads_major(qkv[:, D:2 * D])
    v = heads_major(qkv[:, 2 * D:3 * D])

    # batched-over-heads score matmul; single mask; single softmax
    scores = jnp.einsum('hqd,hkd->hqk', q, k, preferred_element_type=jnp.float32)  # (heads, S, S)
    need_pad_mask = s_real < S
    if causal or need_pad_mask:
        col = lax.broadcasted_iota(jnp.int32, (S, S), 1)
        bad = jnp.zeros((S, S), dtype=jnp.bool_)
        if causal:
            row = lax.broadcasted_iota(jnp.int32, (S, S), 0)
            bad = col > row
        if need_pad_mask:
            bad = bad | (col >= s_real)
        scores = jnp.where(bad[None, :, :], jnp.float32(-1e30), scores)
    scores = scores - jnp.max(scores, axis=-1, keepdims=True)
    p = jnp.exp(scores)
    p = p * pl.reciprocal(jnp.sum(p, axis=-1, keepdims=True), approx=True)         # EUP slot

    o = jnp.einsum('hqk,hkd->hqd', p.astype(jnp.bfloat16), v,
                   preferred_element_type=jnp.float32)                             # (heads, S, hd)
    o = o.transpose(1, 0, 2).reshape(S, D)                                          # single head-merge relayout
    attn = jnp.dot(o.astype(jnp.bfloat16), wo[0], preferred_element_type=jnp.float32) + bo[0]
    x = x + attn                                                                    # residual (fp32)

    # ---- MLP ----
    # TODO(synk): for ViT-L-class widths on v7x, tile wfc/wpr over the 4*D hidden dim
    # (pltpu.emit_pipeline + fp32 accumulator) instead of full-block weights.
    h2 = _ln(x, ln2w[0], ln2b[0]).astype(jnp.bfloat16)
    h2 = jnp.dot(h2, wfc[0], preferred_element_type=jnp.float32) + bfc[0]
    # TODO(synk): PyTorch nn.GELU() is exact erf GELU; tanh approximation used for
    # guaranteed Mosaic lowering (deviation ~1e-3).
    h2 = jax.nn.gelu(h2, approximate=True)
    h2 = jnp.dot(h2.astype(jnp.bfloat16), wpr[0], preferred_element_type=jnp.float32) + bpr[0]
    x = x + h2                                                                      # residual (fp32)

    res_ref[...] = x

    @pl.when(l == n_layers - 1)
    def _():
        row_idx = eot_ref[b]                                                        # scalar-prefetched pool index
        pooled_ref[0] = res_ref[pl.ds(row_idx, 1), :].astype(pooled_ref.dtype)      # (1, D) lane-dense row


def pallas_tower(x, eot, stacked, lnpre, heads, causal, s_real):
    """x: (B, S_pad, D) fp32.  eot: (B,) int32 pool indices.  stacked: 12 per-layer (L, ...) arrays."""
    B, S, D = x.shape
    L = stacked[0].shape[0]
    fuse = lnpre is not None
    kern = functools.partial(_tower_kernel, heads=heads, causal=causal,
                             s_real=s_real, fuse_input_ln=fuse)

    in_specs = [pl.BlockSpec((1, S, D), lambda b, l, e: (b, 0, 0))]
    extra = []
    if fuse:
        in_specs += [pl.BlockSpec((1, D), lambda b, l, e: (0, 0)),
                     pl.BlockSpec((1, D), lambda b, l, e: (0, 0))]
        extra = list(lnpre)
    in_specs += [pl.BlockSpec((1,) + p.shape[1:], lambda b, l, e: (l, 0, 0)) for p in stacked]

    # TODO(synk): for large-batch training shapes, switch back to per-layer calls with a bf16
    # residual between layers (weights are re-streamed per batch element in this fused grid).
    pooled = pl.pallas_call(
        kern,
        out_shape=jax.ShapeDtypeStruct((B, 1, D), jnp.float32),
        grid_spec=pltpu.PrefetchScalarGridSpec(
            num_scalar_prefetch=1,
            grid=(B, L),
            in_specs=in_specs,
            out_specs=pl.BlockSpec((1, 1, D), lambda b, l, e: (b, 0, 0)),
            scratch_shapes=[pltpu.VMEM((S, D), jnp.float32)]),
        compiler_params=pltpu.CompilerParams(
            dimension_semantics=("parallel", "arbitrary"),   # batch across TCs (v7x), layers serial
            vmem_limit_bytes=_vmem_limit_bytes()),
    )(eot, x.astype(jnp.float32), *extra, *stacked)
    return pooled[:, 0, :]


# ----------------------------------------------------------------------------- fused heads (LN on pooled rows + proj + L2-normalize)
# LN is per-token and both pool types select a single token, so applying the final LN to only
# the pooled (B, D) rows is exactly equivalent and avoids (B*S, D) traffic.
def _vision_head_kernel(x_ref, lnw_ref, lnb_ref, pw_ref, trunk_ref, feat_ref):
    t = _ln(x_ref[...].astype(jnp.float32), lnw_ref[...], lnb_ref[...])            # ln_post on CLS rows
    trunk_ref[...] = t.astype(trunk_ref.dtype)                                     # trunk features (pre-proj)
    f = jnp.dot(t.astype(jnp.bfloat16), pw_ref[...], preferred_element_type=jnp.float32)  # (B, Ep) padded lanes
    ss = jnp.sum(f * f, axis=-1, keepdims=True)                                    # padded lanes are exact zeros
    feat_ref[...] = (f * lax.rsqrt(jnp.maximum(ss, EPS_NORM * EPS_NORM))).astype(feat_ref.dtype)


def pallas_vision_head(cls_tok, lnw, lnb, pw_t):
    B, D = cls_tok.shape
    Ep = pw_t.shape[1]
    return pl.pallas_call(
        _vision_head_kernel,
        out_shape=(jax.ShapeDtypeStruct((B, D), jnp.float32),
                   jax.ShapeDtypeStruct((B, Ep), jnp.float32)),
        grid=(1,),
        in_specs=[pl.BlockSpec((B, D), lambda i: (0, 0)),
                  pl.BlockSpec((1, D), lambda i: (0, 0)),
                  pl.BlockSpec((1, D), lambda i: (0, 0)),
                  pl.BlockSpec((D, Ep), lambda i: (0, 0))],
        out_specs=(pl.BlockSpec((B, D), lambda i: (0, 0)),
                   pl.BlockSpec((B, Ep), lambda i: (0, 0))),
    )(cls_tok.astype(jnp.float32), lnw, lnb, pw_t)


def _text_head_kernel(x_ref, lnw_ref, lnb_ref, pw_ref, feat_ref):
    t = _ln(x_ref[...].astype(jnp.float32), lnw_ref[...], lnb_ref[...])            # ln_final on EOT rows
    f = jnp.dot(t.astype(jnp.bfloat16), pw_ref[...], preferred_element_type=jnp.float32)
    ss = jnp.sum(f * f, axis=-1, keepdims=True)
    feat_ref[...] = (f * lax.rsqrt(jnp.maximum(ss, EPS_NORM * EPS_NORM))).astype(feat_ref.dtype)


def pallas_text_head(pooled, lnw, lnb, pw_t):
    B, D = pooled.shape
    Ep = pw_t.shape[1]
    return pl.pallas_call(
        _text_head_kernel,
        out_shape=jax.ShapeDtypeStruct((B, Ep), jnp.float32),
        grid=(1,),
        in_specs=[pl.BlockSpec((B, D), lambda i: (0, 0)),
                  pl.BlockSpec((1, D), lambda i: (0, 0)),
                  pl.BlockSpec((1, D), lambda i: (0, 0)),
                  pl.BlockSpec((D, Ep), lambda i: (0, 0))],
        out_specs=pl.BlockSpec((B, Ep), lambda i: (0, 0)),
    )(pooled.astype(jnp.float32), lnw, lnb, pw_t)


# ----------------------------------------------------------------------------- parameter init (deterministic, synthetic)
def init_block_params(key, D, heads, mlp_ratio):
    hD = int(D * mlp_ratio)
    hd = D // heads
    qscale = 1.0 / math.sqrt(hd)
    ks = jax.random.split(key, 4)
    std = 0.02
    wqkv = jax.random.normal(ks[0], (3 * D, D)) * std          # in_proj_weight (PyTorch layout)
    wqkv_t = wqkv.T                                            # (D, 3D) pre-transposed
    wqkv_t = wqkv_t.at[:, :D].multiply(qscale)                 # fold 1/sqrt(hd) into q projection
    wo = jax.random.normal(ks[1], (D, D)) * std                # out_proj.weight
    wfc = jax.random.normal(ks[2], (hD, D)) * std              # mlp.c_fc.weight
    wpr = jax.random.normal(ks[3], (D, hD)) * std              # mlp.c_proj.weight
    # big matmul weights stored bf16, pre-transposed (in, out); LN params / biases stay fp32
    return dict(
        ln1w=jnp.ones((1, D), jnp.float32), ln1b=jnp.zeros((1, D), jnp.float32),
        wqkv=wqkv_t.astype(jnp.bfloat16), bqkv=jnp.zeros((1, 3 * D), jnp.float32),
        wo=wo.T.astype(jnp.bfloat16), bo=jnp.zeros((1, D), jnp.float32),
        ln2w=jnp.ones((1, D), jnp.float32), ln2b=jnp.zeros((1, D), jnp.float32),
        wfc=wfc.T.astype(jnp.bfloat16), bfc=jnp.zeros((1, hD), jnp.float32),
        wpr=wpr.T.astype(jnp.bfloat16), bpr=jnp.zeros((1, D), jnp.float32))


_STACK_KEYS = ("ln1w", "ln1b", "wqkv", "bqkv", "wo", "bo",
               "ln2w", "ln2b", "wfc", "bfc", "wpr", "bpr")


def stack_blocks(blocks):
    """Stack per-layer params into (L, ...) arrays for the layer-fused tower kernel."""
    return tuple(jnp.stack([blk[k] for blk in blocks], axis=0) for k in _STACK_KEYS)


def init_lit_params(key, embed_dim, vcfg, tcfg):
    keys = jax.random.split(key, 10)
    std = 0.02
    Ep = _round_up(embed_dim, 128)   # lane-dense projection slab; sliced back to embed_dim in wrapper

    Dv, p, img = vcfg["width"], vcfg["patch_size"], vcfg["image_size"]
    nP = (img // p) ** 2
    conv_w = jax.random.normal(keys[0], (Dv, 3 * p * p)) * std                  # Conv2d weight, flattened
    proj_w = jax.random.normal(keys[4], (embed_dim, Dv)) * std
    proj_w_t = jnp.zeros((Dv, Ep), jnp.float32).at[:, :embed_dim].set(proj_w.T)
    visual = {
        "conv_w_t": conv_w.T.astype(jnp.bfloat16),                              # (3*p*p, Dv) pre-transposed bf16
        "class_emb": (jax.random.normal(keys[1], (Dv,)) * std).astype(jnp.float32),
        "pos_emb": (jax.random.normal(keys[2], (nP + 1, Dv)) * std).astype(jnp.float32),
        "ln_pre_w": jnp.ones((1, Dv), jnp.float32),
        "ln_pre_b": jnp.zeros((1, Dv), jnp.float32),
        "ln_post_w": jnp.ones((1, Dv), jnp.float32),
        "ln_post_b": jnp.zeros((1, Dv), jnp.float32),
        "stacked": stack_blocks([init_block_params(k, Dv, vcfg["heads"], vcfg["mlp_ratio"])
                                 for k in jax.random.split(keys[3], vcfg["layers"])]),
        "proj_w_t": proj_w_t.astype(jnp.bfloat16),                              # (Dv, Ep) zero-padded
    }

    Dt = tcfg["width"]
    text_proj_w = jax.random.normal(keys[8], (embed_dim, Dt)) * std
    text_proj_w_t = jnp.zeros((Dt, Ep), jnp.float32).at[:, :embed_dim].set(text_proj_w.T)
    text = {
        "token_emb": (jax.random.normal(keys[5], (tcfg["vocab_size"], Dt)) * std).astype(jnp.float32),
        "pos_emb": (jax.random.normal(keys[6], (tcfg["context_length"], Dt)) * std).astype(jnp.float32),
        "ln_final_w": jnp.ones((1, Dt), jnp.float32),
        "ln_final_b": jnp.zeros((1, Dt), jnp.float32),
        "stacked": stack_blocks([init_block_params(k, Dt, tcfg["heads"], tcfg["mlp_ratio"])
                                 for k in jax.random.split(keys[7], tcfg["layers"])]),
        "text_proj_w_t": text_proj_w_t.astype(jnp.bfloat16),                    # proj_bias=False
    }

    return {
        "visual": visual,
        "text": text,
        "vision_cfg": vcfg,
        "text_cfg": tcfg,
        "embed_dim": embed_dim,
        "logit_scale": jnp.asarray(math.log(1.0 / 0.07), jnp.float32),          # init_logit_scale
    }


# ----------------------------------------------------------------------------- LiT.forward (output_dict=False, logit_bias=None)
def lit_forward(params, image, text):
    vcfg, tcfg, E = params["vision_cfg"], params["text_cfg"], params["embed_dim"]
    vp, tp = params["visual"], params["text"]

    # --- image tower: patch-embed -> [CLS] -> +pos -> layer-fused blocks (ln_pre fused) -> head ---
    B, C, H, W = image.shape
    p, Dv = vcfg["patch_size"], vcfg["width"]
    nH, nW = H // p, W // p
    # patch extraction (glue): inner order (c, ph, pw) matches flattened Conv2d weights
    patches = (image.reshape(B, C, nH, p, nW, p)
               .transpose(0, 2, 4, 1, 3, 5)
               .reshape(B * nH * nW, C * p * p)).astype(jnp.bfloat16)            # bf16 pre-cast (halves HBM read)
    x = pallas_linear(patches, vp["conv_w_t"]).reshape(B, nH * nW, Dv)            # stride-p Conv2d (bias=False)
    cls = jnp.broadcast_to(vp["class_emb"].reshape(1, 1, Dv), (B, 1, Dv))
    toks = jnp.concatenate([cls, x], axis=1) + vp["pos_emb"][None, :, :]
    s_real_v = nH * nW + 1
    s_pad_v = _pad_seq(s_real_v)
    if s_pad_v > s_real_v:
        toks = jnp.pad(toks, ((0, 0), (0, s_pad_v - s_real_v), (0, 0)))
    cls_idx = jnp.zeros((B,), jnp.int32)                                          # pool_type='tok' -> row 0
    cls_tok = pallas_tower(toks, cls_idx, vp["stacked"],
                           (vp["ln_pre_w"], vp["ln_pre_b"]),
                           vcfg["heads"], causal=False, s_real=s_real_v)
    trunk, img_feat_pad = pallas_vision_head(cls_tok, vp["ln_post_w"], vp["ln_post_b"], vp["proj_w_t"])
    image_features = img_feat_pad[:, :E]                                          # strip lane padding

    # --- text tower: embed -> layer-fused causal blocks (EOT pooled in-kernel) -> head ---
    Bt, Lt = text.shape
    Dt = tcfg["width"]
    xt = jnp.take(tp["token_emb"], text, axis=0) + tp["pos_emb"][None, :Lt, :]    # embed (glue gather)
    s_pad_t = _pad_seq(Lt)
    if s_pad_t > Lt:
        xt = jnp.pad(xt, ((0, 0), (0, s_pad_t - Lt), (0, 0)))
    eot = jnp.argmax(text, axis=-1).astype(jnp.int32)                             # pool_type='argmax'
    pooled = pallas_tower(xt, eot, tp["stacked"], None,
                          tcfg["heads"], causal=True, s_real=Lt)
    txt_feat_pad = pallas_text_head(pooled, tp["ln_final_w"], tp["ln_final_b"], tp["text_proj_w_t"])
    text_features = txt_feat_pad[:, :E]

    return trunk, image_features, text_features, jnp.exp(params["logit_scale"])


if __name__ == "__main__":
    embed_dim = 32
    vision_cfg = dict(width=32, heads=4, layers=2, patch_size=8, image_size=16, mlp_ratio=4.0)
    text_cfg = dict(width=32, heads=4, layers=2, context_length=8, vocab_size=64, mlp_ratio=4.0)

    params = init_lit_params(jax.random.PRNGKey(0), embed_dim, vision_cfg, text_cfg)

    k_img, k_txt = jax.random.split(jax.random.PRNGKey(0))
    image = jax.random.normal(k_img, (2, 3, 16, 16), jnp.float32)      # NCHW
    text = jax.random.randint(k_txt, (2, 8), 1, 64, dtype=jnp.int32)   # token ids

    out = lit_forward(params, image, text)
    jax.block_until_ready(out)

    trunk, img_feat, txt_feat, scale = out
    assert trunk.shape == (2, 32) and img_feat.shape == (2, 32) and txt_feat.shape == (2, 32)
    assert bool(jnp.all(jnp.isfinite(img_feat))) and bool(jnp.all(jnp.isfinite(txt_feat)))
    print("KERNEL_OK")
</pallas_src>

<mosaic_0001>
module attributes {stable_mosaic.version = 11 : i64} {
  func.func @_linear_kernel(%arg0: i32, %arg1: memref<8x192xbf16, #tpu.memory_space<vmem>>, %arg2: memref<192x32xbf16, #tpu.memory_space<vmem>>, %arg3: memref<8x32xf32, #tpu.memory_space<vmem>>) attributes {dimension_semantics = [#tpu.dimension_semantics<parallel>], iteration_bounds = array<i64: 1>, scalar_prefetch = 0 : i64, scratch_operands = 0 : i64, tpu.core_type = #tpu.core_type<tc>, window_params = [{transform_indices = @transform_0, window_bounds = array<i64: 8, 192>}, {pipeline_mode = #tpu.pipeline_mode<synchronous>, transform_indices = @transform_1, window_bounds = array<i64: 192, 32>}, {transform_indices = @transform_2, window_bounds = array<i64: 8, 32>}]} {
    %c0 = arith.constant 0 : index
    %c0_0 = arith.constant 0 : index
    %0 = vector.load %arg1[%c0, %c0_0] : memref<8x192xbf16, #tpu.memory_space<vmem>>, vector<8x192xbf16>
    %c0_1 = arith.constant 0 : index
    %c0_2 = arith.constant 0 : index
    %1 = vector.load %arg2[%c0_1, %c0_2] : memref<192x32xbf16, #tpu.memory_space<vmem>>, vector<192x32xbf16>
    %cst = arith.constant dense<0.000000e+00> : vector<8x32xf32>
    %2 = tpu.matmul %0, %1, %cst {dimension_numbers = #tpu.dot_dimension_numbers<[1], [0], [0], [1], [0, 0, 1, 1], [], []>} : vector<8x192xbf16>, vector<192x32xbf16>, vector<8x32xf32> -> vector<8x32xf32>
    %c0_3 = arith.constant 0 : index
    %c0_4 = arith.constant 0 : index
    %3 = vector.load %arg3[%c0_3, %c0_4] : memref<8x32xf32, #tpu.memory_space<vmem>>, vector<8x32xf32>
    tpu.vector_store %arg3[%c0_3, %c0_4], %2 {strides = array<i32>} : memref<8x32xf32, #tpu.memory_space<vmem>>, vector<8x32xf32>,
    return
  }
  func.func @transform_0(%arg0: i32) -> (i32, i32) {
    %c0_i32 = arith.constant 0 : i32
    %c0_i32_0 = arith.constant 0 : i32
    return %arg0, %c0_i32 : i32, i32
  }
  func.func @transform_1(%arg0: i32) -> (i32, i32) {
    %c0_i32 = arith.constant 0 : i32
    %c0_i32_0 = arith.constant 0 : i32
    %c0_i32_1 = arith.constant 0 : i32
    return %c0_i32, %c0_i32_0 : i32, i32
  }
  func.func @transform_2(%arg0: i32) -> (i32, i32) {
    %c0_i32 = arith.constant 0 : i32
    %c0_i32_0 = arith.constant 0 : i32
    return %arg0, %c0_i32 : i32, i32
  }
}

</mosaic_0001>

<llo_original>
// kernel: tpu_custom_call.1
$region0: #{tpu_custom_call.1}
  #allocation0 [shape = 'u32[]', space=smem, size = 0x4, offset = 0x4, fixed_abs, tag = 'smem constant byte address 0x4 - core index']
  #allocation1 [shape = 'u32[144,128]{1,0:T(1,128)}', space=vmem, size = 0x12000, scoped, tag = 'internal scratch']
  %s0 = inlined_call_operand.hbm [shape: bf16[8,192], index: 0, kind: input, shape index: {}]
  %s1 = inlined_call_operand.hbm [shape: bf16[192,32], index: 1, kind: input, shape index: {}]
  %s2 = inlined_call_operand.hbm [shape: f32[8,32], index: 2, kind: output, shape index: {}]
  %s3 = sld [smem:[#allocation0]]
  $region26: #{tpu_custom_call.1} parent=0
    _
  %s5 = ssub.s32 1, %s3
  %s6 = scalar_select 0, %s5, %s3
  $region1: #{tpu_custom_call.1} parent=0
    #allocation2 [shape = 'u8[4096]{0}', space=vmem, size = 0x1000, scoped, tag = 'input window, operand 0, single buffered']
    #allocation3 [shape = 's32[1]{0}', space=sflag, size = 0x4, scoped, tag = 'scoped memory for tpu_custom_call.1']
    #allocation4 [shape = 's32[1]{0}', space=sflag, size = 0x4, scoped, tag = 'scoped memory for tpu_custom_call.1']
    #allocation5 [shape = 'u8[49152]{0}', space=vmem, size = 0xc000, scoped, tag = 'input window, operand 1, single buffered']
    #allocation6 [shape = 's32[1]{0}', space=sflag, size = 0x4, scoped, tag = 'scoped memory for tpu_custom_call.1']
    #allocation7 [shape = 'u8[4096]{0}', space=vmem, size = 0x1000, scoped, tag = 'output window, operand 0, single buffered']
    %7 = vsyncpa [#allocation3], 0
    %8 = vsyncpa [#allocation6], 0
    %9 = vsyncpa [#allocation4], 0
    // Predicated region
    $region2: #{tpu_custom_call.1} parent=1 // pred_check
      _
    $region3: #{tpu_custom_call.1} parent=1 // pred_check_branch
      %11 = sbr.rel (0) target = $region5
    $region4: #{tpu_custom_call.1} parent=1 // pred_region
      %s13 = ssub.s32 128, 128
      %14 = vsyncadd [#allocation3], %s13
      %s16 = sshll.u32 [#allocation2], 4
      %s17 = int_to_ptr.vmem [resolvable:$true] %s16
      %19 = dma.hbm_to_vmem [thread:$0]  %s0, 128, %s17, [#allocation3]
    $region5: #{tpu_custom_call.1} parent=1 // pred_fallthru
      _
    // Predicated region
    $region6: #{tpu_custom_call.1} parent=1 // pred_check
      _
    $region7: #{tpu_custom_call.1} parent=1 // pred_check_branch
      %21 = sbr.rel (0) target = $region9
    $region8: #{tpu_custom_call.1} parent=1 // pred_region
      %s23 = ssub.s32 1536, 1536
      %24 = vsyncadd [#allocation6], %s23
      %s25 = sshll.u32 [#allocation5], 4
      %s26 = int_to_ptr.vmem [resolvable:$true] %s25
      %31 = dma.hbm_to_vmem [thread:$0]  %s1, 1536, %s26, [#allocation6], 64, 64, 4
    $region9: #{tpu_custom_call.1} parent=1 // pred_fallthru
      _
    // Predicated region
    $region10: #{tpu_custom_call.1} parent=1 // pred_check
      _
    $region11: #{tpu_custom_call.1} parent=1 // pred_check_branch
      %33 = sbr.rel (0) target = $region13
    $region12: #{tpu_custom_call.1} parent=1 // pred_region
      %34 = dma.done [#allocation3], 128
    $region13: #{tpu_custom_call.1} parent=1 // pred_fallthru
      _
    // Predicated region
    $region14: #{tpu_custom_call.1} parent=1 // pred_check
      _
    $region15: #{tpu_custom_call.1} parent=1 // pred_check_branch
      %36 = sbr.rel (0) target = $region17
    $region16: #{tpu_custom_call.1} parent=1 // pred_region
      %37 = dma.done [#allocation6], 1536
    $region17: #{tpu_custom_call.1} parent=1 // pred_fallthru
      _
    %v39 = vld [vmem:[#allocation2] sm:$0xff]
    %v40 = vld [vmem:[#allocation5] sm:$0xf]
    %v41 = vld [vmem:[#allocation5 + $0x4] sm:$0xf]
    %v42 = vld [vmem:[#allocation5 + $0x8] sm:$0xf]
    %v43 = vld [vmem:[#allocation5 + $0xc] sm:$0xf]
    %v44 = vld [vmem:[#allocation5 + $0x10] sm:$0xf]
    %v45 = vld [vmem:[#allocation5 + $0x14] sm:$0xf]
    %v46 = vld [vmem:[#allocation5 + $0x18] sm:$0xf]
    %v47 = vld [vmem:[#allocation5 + $0x1c] sm:$0xf]
    %v48 = vld [vmem:[#allocation5 + $0x20] sm:$0xf]
    %v49 = vld [vmem:[#allocation5 + $0x24] sm:$0xf]
    %v50 = vld [vmem:[#allocation5 + $0x28] sm:$0xf]
    %v51 = vld [vmem:[#allocation5 + $0x2c] sm:$0xf]
    %v52 = vld [vmem:[#allocation5 + $0x30] sm:$0xf]
    %v53 = vld [vmem:[#allocation5 + $0x34] sm:$0xf]
    %v54 = vld [vmem:[#allocation5 + $0x38] sm:$0xf]
    %v55 = vld [vmem:[#allocation5 + $0x3c] sm:$0xf]
    %v56 = vld [vmem:[#allocation5 + $0x40] sm:$0xf]
    %v57 = vld [vmem:[#allocation5 + $0x44] sm:$0xf]
    %v58 = vld [vmem:[#allocation5 + $0x48] sm:$0xf]
    %v59 = vld [vmem:[#allocation5 + $0x4c] sm:$0xf]
    %v60 = vld [vmem:[#allocation5 + $0x50] sm:$0xf]
    %v61 = vld [vmem:[#allocation5 + $0x54] sm:$0xf]
    %v62 = vld [vmem:[#allocation5 + $0x58] sm:$0xf]
    %v63 = vld [vmem:[#allocation5 + $0x5c] sm:$0xf]
    %v65 = vunpack.c.l.b16 %v39
    %v66 = vunpack.c.h.b16 %v39
    %v67 = vpack.c.b16 %v65, %v65
    %v68 = vpack.c.b16 %v66, %v66
    %v94 = vunpack.c.l.b16 %v40
    %v95 = vunpack.c.l.b16 %v41
    %v96 = vunpack.c.l.b16 %v42
    %v97 = vunpack.c.l.b16 %v43
    %v98 = vunpack.c.l.b16 %v44
    %v99 = vunpack.c.l.b16 %v45
    %v100 = vunpack.c.l.b16 %v46
    %v101 = vunpack.c.l.b16 %v47
    %v102 = vunpack.c.l.b16 %v48
    %v103 = vunpack.c.l.b16 %v49
    %v104 = vunpack.c.l.b16 %v50
    %v105 = vunpack.c.l.b16 %v51
    %v106 = vunpack.c.l.b16 %v52
    %v107 = vunpack.c.l.b16 %v53
    %v108 = vunpack.c.l.b16 %v54
    %v109 = vunpack.c.l.b16 %v55
    %v110 = vunpack.c.l.b16 %v56
    %v111 = vunpack.c.l.b16 %v57
    %v112 = vunpack.c.l.b16 %v58
    %v113 = vunpack.c.l.b16 %v59
    %v114 = vunpack.c.l.b16 %v60
    %v115 = vunpack.c.l.b16 %v61
    %v116 = vunpack.c.l.b16 %v62
    %v117 = vunpack.c.l.b16 %v63
    %v118 = vpack.c.b16 %v95, %v94
    %v119 = vpack.c.b16 %v97, %v96
    %v120 = vpack.c.b16 %v99, %v98
    %v121 = vpack.c.b16 %v101, %v100
    %v122 = vpack.c.b16 %v103, %v102
    %v123 = vpack.c.b16 %v105, %v104
    %v124 = vpack.c.b16 %v107, %v106
    %v125 = vpack.c.b16 %v109, %v108
    %v126 = vpack.c.b16 %v111, %v110
    %v127 = vpack.c.b16 %v113, %v112
    %v128 = vpack.c.b16 %v115, %v114
    %v129 = vpack.c.b16 %v117, %v116
    %vm142 = vcmask 523264
    %v144 = vsel %vm142, %v68, 0
    %146 = vmatprep.subr.bf16.mxu0 0
    %147 = vmatpush1.bf16.msra.mxu0 %v118
    %148 = vmatprep.subr.bf16.mxu0 0
    %149 = vmatpush1.bf16.msra.mxu0 %v119
    %150 = vmatprep.subr.bf16.mxu0 0
    %151 = vmatpush1.bf16.msra.mxu0 %v120
    %152 = vmatprep.subr.bf16.mxu0 0
    %153 = vmatpush1.bf16.msra.mxu0 %v121
    %154 = vmatprep.subr.bf16.mxu0 0
    %155 = vmatpush1.bf16.msra.mxu0 %v122
    %156 = vmatprep.subr.bf16.mxu0 0
    %157 = vmatpush1.bf16.msra.mxu0 %v123
    %158 = vmatprep.subr.bf16.mxu0 0
    %159 = vmatpush1.bf16.msra.mxu0 %v124
    %160 = vmatprep.subr.bf16.mxu0 0
    %161 = vmatpush1.bf16.msra.mxu0 %v125
    %162 = vmatprep.subr.bf16.mxu0 0
    %163 = vmatpush1.bf16.msra.mxu0 %v126
    %164 = vmatprep.subr.bf16.mxu0 0
    %165 = vmatpush1.bf16.msra.mxu0 %v127
    %166 = vmatprep.subr.bf16.mxu0 0
    %167 = vmatpush1.bf16.msra.mxu0 %v128
    %168 = vmatprep.subr.bf16.mxu0 0
    %169 = vmatpush1.bf16.msra.mxu0 %v129
    %170 = vmatprep.subr.bf16.mxu0 0
    %171 = vmatpush1.bf16.msra.mxu0 0
    %172 = vmatprep.subr.bf16.mxu0 0
    %173 = vmatpush1.bf16.msra.mxu0 0
    %174 = vmatprep.subr.bf16.mxu0 0
    %175 = vmatpush1.bf16.msra.mxu0 0
    %176 = vmatprep.subr.bf16.mxu0 0
    %177 = vmatpush1.bf16.msra.mxu0 0
    %178 = vmatprep.mubr.bf16.mxu0 %v144
    %179 = vmatmul.mubr.bf16.gmra.mrb[0].mxu0 %v67
    %v180 = vpop.f32.mrb[0].mxu0
    %v181 = vadd.f32 0.0, %v180
    %v182 = vpop.f32.mrb[0].mxu0
    %v183 = vpop.f32.mrb[0].mxu0
    %v184 = vpop.f32.mrb[0].mxu0
    %185 = vdwg.mxu0
    %vm186 = vcmask 261120
    %187 = vst.msk [vmem:[#allocation7] sm:$0xff] %vm186, %v181
    // Predicated region
    $region18: #{tpu_custom_call.1} parent=1 // pred_check
      _
    $region19: #{tpu_custom_call.1} parent=1 // pred_check_branch
      %189 = sbr.rel (0) target = $region21
    $region20: #{tpu_custom_call.1} parent=1 // pred_region
      %s191 = ssub.s32 128, 128
      %192 = vsyncadd [#allocation4], %s191
      %s194 = sshll.u32 [#allocation7], 4
      %s195 = int_to_ptr.vmem [resolvable:$true] %s194
      %197 = dma.vmem_to_hbm [thread:$0]  %s195, 128, %s2, [#allocation4]
    $region21: #{tpu_custom_call.1} parent=1 // pred_fallthru
      _
    // Predicated region
    $region22: #{tpu_custom_call.1} parent=1 // pred_check
      _
    $region23: #{tpu_custom_call.1} parent=1 // pred_check_branch
      %199 = sbr.rel (0) target = $region25
    $region24: #{tpu_custom_call.1} parent=1 // pred_region
      %200 = dma.done [#allocation4], 128
    $region25: #{tpu_custom_call.1} parent=1 // pred_fallthru
      _
    %201 = vsyncpa [#allocation3], 1
    %202 = vsyncpa [#allocation6], 1
    %203 = vsyncpa [#allocation4], 1

</llo_original>
